<compile_context>
chip_gen: v7x
topology: tpu7x:2x2x1
jax: 0.10.0
libtpu: 0.0.40
codegen_flags: <defaults>
</compile_context>

<pallas_src>
import functools

import jax
import jax.numpy as jnp
from jax import lax
from jax.experimental import pallas as pl
from jax.experimental.pallas import tpu as pltpu


def _round_up(x, m):
    return ((x + m - 1) // m) * m


def _vmem_capacity_bytes():
    """Per-core VMEM capacity; conservative (v7x) fallback if unqueryable."""
    try:
        cap = getattr(pltpu.get_tpu_info(), "vmem_capacity_bytes", None)
        if cap:
            return int(cap)
    except Exception:
        pass
    return 64 * 1024 * 1024


def _largest_tile(hw_span, tk_max):
    """Largest 128-multiple divisor of hw_span (a 128 multiple) that is <= tk_max."""
    m = hw_span // 128
    cap = max(1, tk_max // 128)
    best = 1
    d = 1
    while d * d <= m:
        if m % d == 0:
            for c in (d, m // d):
                if c <= cap and c > best:
                    best = c
        d += 1
    return best * 128


def _style_loss_kernel(tgt_ref, inp_ref, o_ref, g_in_ref, g_tg_ref, *, gram_scale):
    k = pl.program_id(2)

    # Fresh gram accumulators at the start of each (split, batch) k-sweep.
    @pl.when(k == 0)
    def _():
        g_in_ref[...] = jnp.zeros_like(g_in_ref)
        g_tg_ref[...] = jnp.zeros_like(g_tg_ref)

    # (ch_p, tk) feature tiles for this step, in their native dtype.
    x = inp_ref[0]
    t = tgt_ref[0]

    # NT contraction: contract the hw-tile axis of each tile with itself so the
    # MXU consumes the tile as both operands without a materialized transpose.
    # TODO(synk): verify in the Mosaic dump this does not lower to a per-step
    # vxpose; if it does, transpose once into scratch and reuse it.
    dn = (((1,), (1,)), ((), ()))
    g_in_ref[...] += lax.dot_general(x, x, dimension_numbers=dn,
                                     preferred_element_type=jnp.float32)
    g_tg_ref[...] += lax.dot_general(t, t, dimension_numbers=dn,
                                     preferred_element_type=jnp.float32)

    # After the last hw chunk of this split: emit the (linear) partial gram
    # difference; the wrapper sums splits, then does abs + mean.
    @pl.when(k == pl.num_programs(2) - 1)
    def _():
        o_ref[0, 0] = (g_in_ref[...] - g_tg_ref[...]) * gram_scale


def style_loss(target_feature, inputs):
    """L1 loss between gram matrices of `inputs` and `target_feature` (NCHW)."""
    assert target_feature.shape == inputs.shape
    assert target_feature.dtype == inputs.dtype
    bs, ch, h, w = inputs.shape
    hw = h * w

    gram_scale = 1.0 / float(ch * h * w)       # matches / (ch * h * w)
    loss_scale = 1.0 / float(bs * ch * ch)     # L1Loss mean over (bs, ch, ch)

    itemsize = jnp.dtype(inputs.dtype).itemsize
    pack = max(8, 32 // itemsize)              # 8 f32, 16 bf16, 32 int8/fp8
    ch_p = max(pack, _round_up(ch, pack))
    hw_p = max(128, _round_up(hw, 128))        # minimal lane padding only

    # bs == 1 (common in style transfer): split the hw reduction into two
    # 'parallel' halves so both v7x TensorCores do work.  Negligible overhead
    # on single-core generations (one extra small gram-diff writeback).
    n_split = 1
    if bs == 1 and hw_p >= 256 and (hw_p // 128) % 2 == 0:
        n_split = 2
    hw_span = hw_p // n_split

    # VMEM budgeting: leave ~25% headroom of physical per-core VMEM; reserve
    # the gram scratch and the double-buffered output block, spend the rest on
    # double-buffered input tiles (2 tensors x 2 buffers).
    cap = _vmem_capacity_bytes()
    usable = (cap * 3) // 4
    scratch_bytes = 2 * ch_p * ch_p * 4
    out_bytes = 2 * ch_p * ch_p * 4
    per_col = 2 * 2 * ch_p * itemsize
    tile_budget = usable - scratch_bytes - out_bytes
    if tile_budget >= per_col * 128:
        tk_max = (tile_budget // per_col) // 128 * 128
    else:
        tk_max = 128
    tk = _largest_tile(hw_span, tk_max)
    nks = hw_span // tk

    total_vmem = 2 * 2 * ch_p * tk * itemsize + scratch_bytes + out_bytes
    vmem_limit = int(min(cap, max(32 << 20, total_vmem + (4 << 20))))

    def prep(x):
        f = x.reshape(bs, ch, hw)              # free trailing-dim collapse
        if ch_p == ch and hw_p == hw:
            return f                           # no extra HBM copy when aligned
        return jnp.pad(f, ((0, 0), (0, ch_p - ch), (0, hw_p - hw)))

    tgt = prep(target_feature)
    inp = prep(inputs)

    kernel = functools.partial(_style_loss_kernel, gram_scale=gram_scale)

    in_map = lambda s, b, k: (b, 0, s * nks + k)
    out_map = lambda s, b, k: (s, b, 0, 0)

    partials = pl.pallas_call(
        kernel,
        out_shape=jax.ShapeDtypeStruct((n_split, bs, ch_p, ch_p), jnp.float32),
        grid_spec=pltpu.PrefetchScalarGridSpec(
            num_scalar_prefetch=0,
            grid=(n_split, bs, nks),
            in_specs=[
                pl.BlockSpec((1, ch_p, tk), in_map),
                pl.BlockSpec((1, ch_p, tk), in_map),
            ],
            out_specs=pl.BlockSpec((1, 1, ch_p, ch_p), out_map),
            scratch_shapes=[
                pltpu.VMEM((ch_p, ch_p), jnp.float32),   # gram accumulator (inputs)
                pltpu.VMEM((ch_p, ch_p), jnp.float32),   # gram accumulator (target)
            ],
        ),
        compiler_params=pltpu.CompilerParams(
            dimension_semantics=("parallel", "parallel", "arbitrary"),
            vmem_limit_bytes=vmem_limit,
        ),
    )(tgt, inp)

    # The gram difference is linear in the per-split partial grams, so summing
    # splits before the (nonlinear) abs is exact.  Zero-padded channels give
    # zero rows/cols in both grams, so they contribute nothing to the sum.
    diff = jnp.sum(partials, axis=0)
    return jnp.sum(jnp.abs(diff)) * loss_scale


def _reference_style_loss(target_feature, inputs):
    def gram(x):
        bs, ch, h, w = x.shape
        f = x.reshape(bs, ch, h * w)
        return jnp.einsum("bcn,bdn->bcd", f, f) / (ch * h * w)

    return jnp.mean(jnp.abs(gram(inputs) - gram(target_feature)))


if __name__ == "__main__":
    key = jax.random.PRNGKey(0)

    cases = [
        (2, 4, 16, 16),    # aligned: no wrapper padding copy
        (1, 8, 16, 16),    # bs == 1: exercises the split-reduction parallel axis
        (2, 5, 10, 10),    # unaligned ch / hw: minimal padding path
    ]
    for i, (bs, ch, h, w) in enumerate(cases):
        k1, k2 = jax.random.split(jax.random.fold_in(key, i))
        target_feature = jax.random.normal(k1, (bs, ch, h, w), dtype=jnp.float32)
        inputs = jax.random.normal(k2, (bs, ch, h, w), dtype=jnp.float32)

        loss = style_loss(target_feature, inputs)
        jax.block_until_ready(loss)

        ref = _reference_style_loss(target_feature, inputs)
        assert jnp.allclose(loss, ref, rtol=3e-5, atol=1e-6), (i, loss, ref)

    print("KERNEL_OK")
</pallas_src>

<mosaic_0001>
module attributes {stable_mosaic.version = 11 : i64} {
  func.func @_style_loss_kernel(%arg0: i32, %arg1: i32, %arg2: i32, %arg3: memref<1x8x256xf32, #tpu.memory_space<vmem>>, %arg4: memref<1x8x256xf32, #tpu.memory_space<vmem>>, %arg5: memref<1x1x8x8xf32, #tpu.memory_space<vmem>>, %arg6: memref<8x8xf32, #tpu.memory_space<vmem>>, %arg7: memref<8x8xf32, #tpu.memory_space<vmem>>) attributes {dimension_semantics = [#tpu.dimension_semantics<parallel>, #tpu.dimension_semantics<parallel>, #tpu.dimension_semantics<arbitrary>], iteration_bounds = array<i64: 1, 2, 1>, scalar_prefetch = 0 : i64, scratch_operands = 2 : i64, tpu.core_type = #tpu.core_type<tc>, window_params = [{transform_indices = @transform_0, window_bounds = array<i64: 1, 8, 256>}, {transform_indices = @transform_1, window_bounds = array<i64: 1, 8, 256>}, {transform_indices = @transform_2, window_bounds = array<i64: 1, 1, 8, 8>}]} {
    %c0_i32 = arith.constant 0 : i32
    %0 = arith.cmpi eq, %arg2, %c0_i32 : i32
    %1 = arith.extui %0 : i1 to i32
    %c0_i32_0 = arith.constant 0 : i32
    %2 = arith.cmpi ne, %1, %c0_i32_0 : i32
    scf.if %2 {
      %cst_17 = arith.constant 0.000000e+00 : f32
      %18 = vector.broadcast %cst_17 : f32 to vector<8x8xf32>
      %c0_18 = arith.constant 0 : index
      %c0_19 = arith.constant 0 : index
      %19 = vector.load %arg6[%c0_18, %c0_19] : memref<8x8xf32, #tpu.memory_space<vmem>>, vector<8x8xf32>
      tpu.vector_store %arg6[%c0_18, %c0_19], %18 {strides = array<i32>} : memref<8x8xf32, #tpu.memory_space<vmem>>, vector<8x8xf32>,
      %cst_20 = arith.constant 0.000000e+00 : f32
      %20 = vector.broadcast %cst_20 : f32 to vector<8x8xf32>
      %c0_21 = arith.constant 0 : index
      %c0_22 = arith.constant 0 : index
      %21 = vector.load %arg7[%c0_21, %c0_22] : memref<8x8xf32, #tpu.memory_space<vmem>>, vector<8x8xf32>
      tpu.vector_store %arg7[%c0_21, %c0_22], %20 {strides = array<i32>} : memref<8x8xf32, #tpu.memory_space<vmem>>, vector<8x8xf32>,
    } else {
    }
    %c0 = arith.constant 0 : index
    %c0_1 = arith.constant 0 : index
    %c0_2 = arith.constant 0 : index
    %3 = vector.load %arg4[%c0, %c0_1, %c0_2] : memref<1x8x256xf32, #tpu.memory_space<vmem>>, vector<1x8x256xf32>
    %4 = vector.shape_cast %3 : vector<1x8x256xf32> to vector<8x256xf32>
    %c0_3 = arith.constant 0 : index
    %c0_4 = arith.constant 0 : index
    %c0_5 = arith.constant 0 : index
    %5 = vector.load %arg3[%c0_3, %c0_4, %c0_5] : memref<1x8x256xf32, #tpu.memory_space<vmem>>, vector<1x8x256xf32>
    %6 = vector.shape_cast %5 : vector<1x8x256xf32> to vector<8x256xf32>
    %c0_6 = arith.constant 0 : index
    %c0_7 = arith.constant 0 : index
    %7 = vector.load %arg6[%c0_6, %c0_7] : memref<8x8xf32, #tpu.memory_space<vmem>>, vector<8x8xf32>
    %cst = arith.constant dense<0.000000e+00> : vector<8x8xf32>
    %8 = tpu.matmul %4, %4, %cst {dimension_numbers = #tpu.dot_dimension_numbers<[1], [1], [0], [0], [0, 0, 1, 0], [], []>} : vector<8x256xf32>, vector<8x256xf32>, vector<8x8xf32> -> vector<8x8xf32>
    %9 = arith.addf %7, %8 : vector<8x8xf32>
    %c0_8 = arith.constant 0 : index
    %c0_9 = arith.constant 0 : index
    %10 = vector.load %arg6[%c0_8, %c0_9] : memref<8x8xf32, #tpu.memory_space<vmem>>, vector<8x8xf32>
    tpu.vector_store %arg6[%c0_8, %c0_9], %9 {strides = array<i32>} : memref<8x8xf32, #tpu.memory_space<vmem>>, vector<8x8xf32>,
    %c0_10 = arith.constant 0 : index
    %c0_11 = arith.constant 0 : index
    %11 = vector.load %arg7[%c0_10, %c0_11] : memref<8x8xf32, #tpu.memory_space<vmem>>, vector<8x8xf32>
    %cst_12 = arith.constant dense<0.000000e+00> : vector<8x8xf32>
    %12 = tpu.matmul %6, %6, %cst_12 {dimension_numbers = #tpu.dot_dimension_numbers<[1], [1], [0], [0], [0, 0, 1, 0], [], []>} : vector<8x256xf32>, vector<8x256xf32>, vector<8x8xf32> -> vector<8x8xf32>
    %13 = arith.addf %11, %12 : vector<8x8xf32>
    %c0_13 = arith.constant 0 : index
    %c0_14 = arith.constant 0 : index
    %14 = vector.load %arg7[%c0_13, %c0_14] : memref<8x8xf32, #tpu.memory_space<vmem>>, vector<8x8xf32>
    tpu.vector_store %arg7[%c0_13, %c0_14], %13 {strides = array<i32>} : memref<8x8xf32, #tpu.memory_space<vmem>>, vector<8x8xf32>,
    %c0_i32_15 = arith.constant 0 : i32
    %15 = arith.cmpi eq, %arg2, %c0_i32_15 : i32
    %16 = arith.extui %15 : i1 to i32
    %c0_i32_16 = arith.constant 0 : i32
    %17 = arith.cmpi ne, %16, %c0_i32_16 : i32
    scf.if %17 {
      %c0_17 = arith.constant 0 : index
      %c0_18 = arith.constant 0 : index
      %18 = vector.load %arg6[%c0_17, %c0_18] : memref<8x8xf32, #tpu.memory_space<vmem>>, vector<8x8xf32>
      %c0_19 = arith.constant 0 : index
      %c0_20 = arith.constant 0 : index
      %19 = vector.load %arg7[%c0_19, %c0_20] : memref<8x8xf32, #tpu.memory_space<vmem>>, vector<8x8xf32>
      %20 = arith.subf %18, %19 : vector<8x8xf32>
      %cst_21 = arith.constant 9.765625E-4 : f32
      %21 = vector.broadcast %cst_21 : f32 to vector<8x8xf32>
      %22 = arith.mulf %20, %21 : vector<8x8xf32>
      %c0_22 = arith.constant 0 : index
      %c0_23 = arith.constant 0 : index
      %c0_24 = arith.constant 0 : index
      %c0_25 = arith.constant 0 : index
      %23 = vector.load %arg5[%c0_22, %c0_23, %c0_24, %c0_25] : memref<1x1x8x8xf32, #tpu.memory_space<vmem>>, vector<1x1x8x8xf32>
      %24 = vector.shape_cast %23 : vector<1x1x8x8xf32> to vector<8x8xf32>
      %25 = vector.shape_cast %22 : vector<8x8xf32> to vector<1x1x8x8xf32>
      tpu.vector_store %arg5[%c0_22, %c0_23, %c0_24, %c0_25], %25 {strides = array<i32>} : memref<1x1x8x8xf32, #tpu.memory_space<vmem>>, vector<1x1x8x8xf32>,
    } else {
    }
    return
  }
  func.func @transform_0(%arg0: i32, %arg1: i32, %arg2: i32) -> (i32, i32, i32) {
    %c1_i32 = arith.constant 1 : i32
    %0 = arith.muli %arg0, %c1_i32 : i32
    %1 = arith.addi %0, %arg2 : i32
    %c0_i32 = arith.constant 0 : i32
    %c0_i32_0 = arith.constant 0 : i32
    return %arg1, %c0_i32, %1 : i32, i32, i32
  }
  func.func @transform_1(%arg0: i32, %arg1: i32, %arg2: i32) -> (i32, i32, i32) {
    %c1_i32 = arith.constant 1 : i32
    %0 = arith.muli %arg0, %c1_i32 : i32
    %1 = arith.addi %0, %arg2 : i32
    %c0_i32 = arith.constant 0 : i32
    %c0_i32_0 = arith.constant 0 : i32
    return %arg1, %c0_i32, %1 : i32, i32, i32
  }
  func.func @transform_2(%arg0: i32, %arg1: i32, %arg2: i32) -> (i32, i32, i32, i32) {
    %c0_i32 = arith.constant 0 : i32
    %c0_i32_0 = arith.constant 0 : i32
    %c0_i32_1 = arith.constant 0 : i32
    return %arg0, %arg1, %c0_i32, %c0_i32_0 : i32, i32, i32, i32
  }
}

</mosaic_0001>

<llo_original>
// kernel: tpu_custom_call.1
$region0: #{tpu_custom_call.1}
  #allocation0 [shape = 'u32[]', space=smem, size = 0x4, offset = 0x4, fixed_abs, tag = 'smem constant byte address 0x4 - core index']
  #allocation1 [shape = 'u32[144,128]{1,0:T(1,128)}', space=vmem, size = 0x12000, scoped, tag = 'internal scratch']
  #allocation2 [shape = 'f32[8,8]{1,0:T(8,128)}', space=vmem, size = 0x1000, scoped, tag = 'scratch operand']
  #allocation3 [shape = 'f32[8,8]{1,0:T(8,128)}', space=vmem, size = 0x1000, scoped, tag = 'scratch operand']
  %s0 = inlined_call_operand.hbm [shape: f32[2,8,256], index: 0, kind: input, shape index: {}]
  %s1 = inlined_call_operand.hbm [shape: f32[2,8,256], index: 1, kind: input, shape index: {}]
  %s2 = inlined_call_operand.hbm [shape: f32[1,2,8,8], index: 2, kind: output, shape index: {}]
  %s3 = sld [smem:[#allocation0]]
  $region57: #{tpu_custom_call.1} parent=0
    _
  %s5 = ssub.s32 1, %s3
  %s6 = scalar_select 0, %s5, %s3
  $region1: #{tpu_custom_call.1} parent=0
    #allocation4 [shape = 'u8[16384]{0}', space=vmem, size = 0x4000, scoped, tag = 'input window, operand 0']
    #allocation5 [shape = 's32[2]{0}', space=sflag, size = 0x8, scoped, tag = 'scoped memory for tpu_custom_call.1']
    #allocation6 [shape = 's32[2]{0}', space=sflag, size = 0x8, scoped, tag = 'scoped memory for tpu_custom_call.1']
    #allocation7 [shape = 'u8[16384]{0}', space=vmem, size = 0x4000, scoped, tag = 'input window, operand 1']
    #allocation8 [shape = 's32[2]{0}', space=sflag, size = 0x8, scoped, tag = 'scoped memory for tpu_custom_call.1']
    #allocation9 [shape = 'u8[8192]{0}', space=vmem, size = 0x2000, scoped, tag = 'output window, operand 0']
    %7 = vsyncpa [#allocation5], 0
    %s8 = scalar_lea.sflag [#allocation5], 1
    %9 = vsyncpa %s8, 0
    %10 = vsyncpa [#allocation8], 0
    %s11 = scalar_lea.sflag [#allocation8], 1
    %12 = vsyncpa %s11, 0
    %13 = vsyncpa [#allocation6], 0
    %s14 = scalar_lea.sflag [#allocation6], 1
    %15 = vsyncpa %s14, 0
    loop: start=0, step=1, limit=4
    $region2: #{tpu_custom_call.1} parent=1 // loop_pre_header
      _
    $region3: #{tpu_custom_call.1} parent=1 // loop_header
      %s17 = sphi 0, %s21
      %p18 = scmp.ge.s32.totalorder %s17, 4
      %s24 = sphi 0, %s43
      %s25 = sphi 0, %s39
      %s26 = sphi 0, %s35
      %s27 = sphi 0, %s24
      %s28 = sphi 0, %s25
      %s29 = sphi 0, %s26
      %s30 = sphi 0, %s27
      %s31 = sphi 0, %s28
      %s32 = sphi 0, %s29
      %s50 = sphi 0, %s52
      %s53 = sphi 0, %s50
      %s54 = sphi 0, %s53
      %s70 = sphi 0, %s54
      %s80 = sphi 0, %s82
      %s83 = sphi 0, %s80
      %s84 = sphi 0, %s83
      %s100 = sphi 0, %s84
      %s108 = sphi 0, %s110
      %s111 = sphi 0, %s108
      %s112 = sphi 0, %s111
      %s128 = sphi 0, %s112
    $region4: #{tpu_custom_call.1} parent=1 // loop_header_branch
      %20 = sbr.rel (%p18) target = $region8
    $region5: #{tpu_custom_call.1} parent=1 // loop_body
      %s22 = ssub.s32 %s17, 1
      %s23 = ssub.s32 %s17, 2
      %s33 = sadd.s32 1, %s26
      %p34 = scmp.ge.s32.totalorder %s33, 1
      %s35 = scalar_select %p34, 0, %s33
      %s36 = sadd.s32 1, %s25
      %s37 = scalar_select %p34, %s36, %s25
      %p38 = scmp.ge.s32.totalorder %s37, 2
      %s39 = scalar_select %p38, 0, %s37
      %s40 = sadd.s32 1, %s24
      %s41 = scalar_select %p38, %s40, %s24
      %p42 = scmp.ge.s32.totalorder %s41, 1
      %s43 = scalar_select %p42, 0, %s41
      %s44 = sadd.s32 %s24, %s26
      %s45 = sadd.s32 %s43, %s35
      %s46 = ssub.s32 %s25, %s39
      %s47 = ssub.s32 %s44, %s45
      %s48 = sor.u32 %s46, %s47
      %p49 = scmp.eq.s32.totalorder %s48, 0
      %s51 = sadd.s32 %s50, 1
      %s52 = scalar_select %p49, %s50, %s51
      %p55 = pneg %p49
      %p56 = scmp.eq.s32.totalorder %s17, 1
      %p57 = por %p55, %p56
      %p58 = scmp.ne.s32.totalorder %s50, %s53
      %p59 = scmp.eq.s32.totalorder %s17, 0
      %p60 = por %p58, %p59
      %p61 = scmp.ne.s32.totalorder %s50, %s53
      %p62 = scmp.eq.s32.totalorder %s22, 1
      %p63 = por %p61, %p62
      %p64 = scmp.ne.s32.totalorder %s53, %s54
      %p65 = scmp.eq.s32.totalorder %s22, 0
      %p66 = por %p64, %p65
      %p67 = scmp.ne.s32.totalorder %s53, %s54
      %p68 = scmp.eq.s32.totalorder %s23, 1
      %p69 = por %p67, %p68
      %p71 = scmp.ne.s32.totalorder %s54, %s70
      %p72 = scmp.eq.s32.totalorder %s23, 0
      %p73 = por %p71, %p72
      %s74 = sadd.s32 %s24, %s26
      %s75 = sadd.s32 %s43, %s35
      %s76 = ssub.s32 %s25, %s39
      %s77 = ssub.s32 %s74, %s75
      %s78 = sor.u32 %s76, %s77
      %p79 = scmp.eq.s32.totalorder %s78, 0
      %s81 = sadd.s32 %s80, 1
      %s82 = scalar_select %p79, %s80, %s81
      %p85 = pneg %p79
      %p86 = scmp.eq.s32.totalorder %s17, 1
      %p87 = por %p85, %p86
      %p88 = scmp.ne.s32.totalorder %s80, %s83
      %p89 = scmp.eq.s32.totalorder %s17, 0
      %p90 = por %p88, %p89
      %p91 = scmp.ne.s32.totalorder %s80, %s83
      %p92 = scmp.eq.s32.totalorder %s22, 1
      %p93 = por %p91, %p92
      %p94 = scmp.ne.s32.totalorder %s83, %s84
      %p95 = scmp.eq.s32.totalorder %s22, 0
      %p96 = por %p94, %p95
      %p97 = scmp.ne.s32.totalorder %s83, %s84
      %p98 = scmp.eq.s32.totalorder %s23, 1
      %p99 = por %p97, %p98
      %p101 = scmp.ne.s32.totalorder %s84, %s100
      %p102 = scmp.eq.s32.totalorder %s23, 0
      %p103 = por %p101, %p102
      %s104 = ssub.s32 %s24, %s43
      %s105 = ssub.s32 %s25, %s39
      %s106 = sor.u32 %s104, %s105
      %p107 = scmp.eq.s32.totalorder %s106, 0
      %s109 = sadd.s32 %s108, 1
      %s110 = scalar_select %p107, %s108, %s109
      %p113 = pneg %p107
      %p114 = scmp.eq.s32.totalorder %s17, 1
      %p115 = por %p113, %p114
      %p116 = scmp.ne.s32.totalorder %s108, %s111
      %p117 = scmp.eq.s32.totalorder %s17, 0
      %p118 = por %p116, %p117
      %p119 = scmp.ne.s32.totalorder %s108, %s111
      %p120 = scmp.eq.s32.totalorder %s22, 1
      %p121 = por %p119, %p120
      %p122 = scmp.ne.s32.totalorder %s111, %s112
      %p123 = scmp.eq.s32.totalorder %s22, 0
      %p124 = por %p122, %p123
      %p125 = scmp.ne.s32.totalorder %s111, %s112
      %p126 = scmp.eq.s32.totalorder %s23, 1
      %p127 = por %p125, %p126
      %p129 = scmp.ne.s32.totalorder %s112, %s128
      %p130 = scmp.eq.s32.totalorder %s23, 0
      %p131 = por %p129, %p130
      %p132 = scmp.le.s32.totalorder 1, %s17
      %p133 = scmp.lt.s32.totalorder %s17, 3
      %p134 = pnand %p132, %p133
      %p135 = pneg %p134
      // Predicated region
      $region9: #{tpu_custom_call.1} parent=5 // pred_check
        _
      $region10: #{tpu_custom_call.1} parent=5 // pred_check_branch
        %137 = sbr.rel (%p134) target = $region12
      $region11: #{tpu_custom_call.1} parent=5 // pred_region
        %s138 = ssub.s32 %s17, 1
      $region12: #{tpu_custom_call.1} parent=5 // pred_fallthru
        _
      %p139 = scmp.lt.s32.totalorder %s17, 2
      // Predicated region
      $region13: #{tpu_custom_call.1} parent=5 // pred_check
        %p140 = pneg %p139
      $region14: #{tpu_custom_call.1} parent=5 // pred_check_branch
        %142 = sbr.rel (%p140) target = $region16
      $region15: #{tpu_custom_call.1} parent=5 // pred_region
        // Predicated region
        $region17: #{tpu_custom_call.1} parent=15 // pred_check
          %p143 = pneg %p60
        $region18: #{tpu_custom_call.1} parent=15 // pred_check_branch
          %145 = sbr.rel (%p143) target = $region20
        $region19: #{tpu_custom_call.1} parent=15 // pred_region
          %s146 = sand.u32 %s50, 1
          %s147 = scalar_lea.sflag [#allocation5], %s146
          %s148 = sand.u32 %s50, 1
          %s149 = smul.addr %s148, 16
          %s150 = scalar_lea.vmem [#allocation4], %s149
          %s151 = sadd.s32 %s24, %s26
          %s152 = smul.u32 2, %s151
          %s154 = ssub.s32 256, 256
          %155 = vsyncadd %s147, %s154
          %s156 = smul.addr %s25, 2
          %s157 = sadd.s32 %s152, %s156
          %s158 = smul.addr %s157, 128
          %s159 = scalar_lea.hbm %s0, %s158
          %s161 = sshll.u32 %s150, 4
          %s162 = int_to_ptr.vmem [resolvable:$true] %s161
          %164 = dma.hbm_to_vmem [thread:$0]  %s159, 256, %s162, %s147
        $region20: #{tpu_custom_call.1} parent=15 // pred_fallthru
          _
        // Predicated region
        $region21: #{tpu_custom_call.1} parent=15 // pred_check
          %p165 = pneg %p90
        $region22: #{tpu_custom_call.1} parent=15 // pred_check_branch
          %167 = sbr.rel (%p165) target = $region24
        $region23: #{tpu_custom_call.1} parent=15 // pred_region
          %s168 = sand.u32 %s80, 1
          %s169 = scalar_lea.sflag [#allocation8], %s168
          %s170 = sand.u32 %s80, 1
          %s171 = smul.addr %s170, 16
          %s172 = scalar_lea.vmem [#allocation7], %s171
          %s173 = sadd.s32 %s24, %s26
          %s174 = smul.u32 2, %s173
          %s176 = ssub.s32 256, 256
          %177 = vsyncadd %s169, %s176
          %s178 = smul.addr %s25, 2
          %s179 = sadd.s32 %s174, %s178
          %s180 = smul.addr %s179, 128
          %s181 = scalar_lea.hbm %s1, %s180
          %s183 = sshll.u32 %s172, 4
          %s184 = int_to_ptr.vmem [resolvable:$true] %s183
          %186 = dma.hbm_to_vmem [thread:$0]  %s181, 256, %s184, %s169
        $region24: #{tpu_custom_call.1} parent=15 // pred_fallthru
          _
      $region16: #{tpu_custom_call.1} parent=5 // pred_fallthru
        _
      %p187 = scmp.le.s32.totalorder 1, %s17
      %p188 = scmp.lt.s32.totalorder %s17, 3
      %p189 = pnand %p187, %p188
      %p190 = pneg %p189
      // Predicated region
      $region25: #{tpu_custom_call.1} parent=5 // pred_check
        _
      $region26: #{tpu_custom_call.1} parent=5 // pred_check_branch
        %192 = sbr.rel (%p189) target = $region28
      $region27: #{tpu_custom_call.1} parent=5 // pred_region
        %s193 = ssub.s32 %s17, 1
        %s194 = sand.u32 %s53, 1
        %s195 = scalar_lea.sflag [#allocation5], %s194
        %s196 = sand.u32 %s53, 1
        %s197 = smul.addr %s196, 16
        %s198 = scalar_lea.vmem [#allocation4], %s197
        // Predicated region
        $region29: #{tpu_custom_call.1} parent=27 // pred_check
          %p199 = pneg %p66
        $region30: #{tpu_custom_call.1} parent=27 // pred_check_branch
          %201 = sbr.rel (%p199) target = $region32
        $region31: #{tpu_custom_call.1} parent=27 // pred_region
          %202 = dma.done %s195, 256
        $region32: #{tpu_custom_call.1} parent=27 // pred_fallthru
          _
        %s203 = sand.u32 %s83, 1
        %s204 = scalar_lea.sflag [#allocation8], %s203
        %s205 = sand.u32 %s83, 1
        %s206 = smul.addr %s205, 16
        %s207 = scalar_lea.vmem [#allocation7], %s206
        // Predicated region
        $region33: #{tpu_custom_call.1} parent=27 // pred_check
          %p208 = pneg %p96
        $region34: #{tpu_custom_call.1} parent=27 // pred_check_branch
          %210 = sbr.rel (%p208) target = $region36
        $region35: #{tpu_custom_call.1} parent=27 // pred_region
          %211 = dma.done %s204, 256
        $region36: #{tpu_custom_call.1} parent=27 // pred_fallthru
          _
        %s212 = sand.u32 %s53, 1
        %s213 = scalar_lea.sflag [#allocation5], %s212
        %s214 = sand.u32 %s53, 1
        %s215 = smul.addr %s214, 16
        %s216 = scalar_lea.vmem [#allocation4], %s215
        %p217 = pneg %p66
        %p218 = pneg %p63
        %s219 = sand.u32 %s83, 1
        %s220 = scalar_lea.sflag [#allocation8], %s219
        %s221 = sand.u32 %s83, 1
        %s222 = smul.addr %s221, 16
        %s223 = scalar_lea.vmem [#allocation7], %s222
        %p224 = pneg %p96
        %p225 = pneg %p93
        %p226 = pneg %p124
        %p227 = pneg %p121
        %s228 = sand.u32 %s111, 1
        %s229 = scalar_lea.sflag [#allocation6], %s228
        %s230 = sand.u32 %s111, 1
        %s231 = smul.addr %s230, 8
        %s232 = scalar_lea.vmem [#allocation9], %s231
        %s233 = sadd.s32 %s27, %s29
        %s234 = smul.u32 2, %s233
        %s235 = sadd.s32 %s27, %s29
        %s236 = smul.u32 2, %s235
        %p237 = scmp.eq.s32.totalorder %s29, 0
        // Predicated region
        $region37: #{tpu_custom_call.1} parent=27 // pred_check
          %p238 = pneg %p237
        $region38: #{tpu_custom_call.1} parent=27 // pred_check_branch
          %240 = sbr.rel (%p238) target = $region40
        $region39: #{tpu_custom_call.1} parent=27 // pred_region
          %vm241 = vcmask 64512
          %242 = vst.msk [vmem:[#allocation2] sm:$0xff] %vm241, 0.0
          %243 = vst.msk [vmem:[#allocation3] sm:$0xff] %vm241, 0.0
        $region40: #{tpu_custom_call.1} parent=27 // pred_fallthru
          _
        %v244 = vld [vmem:[%s207] sm:$0xff]
        %v245 = vld [vmem:[%s207 + $0x8] sm:$0xff]
        %v246 = vld [vmem:[%s198] sm:$0xff]
        %v247 = vld [vmem:[%s198 + $0x8] sm:$0xff]
        %v248 = vld [vmem:[#allocation2] sm:$0xff]
        %249 = vmatprep.subr.mxu0 %v245
        %250 = vmatpush1.xpose.msra.mxu0 %v244
        %251 = vmatprep.subr.mxu0 0.0
        %252 = vmatpush1.xpose.msra.mxu0 0.0
        %253 = vmatprep.subr.mxu0 0.0
        %254 = vmatpush1.xpose.msra.mxu0 0.0
        %255 = vmatprep.subr.mxu0 0.0
        %256 = vmatpush1.xpose.msra.mxu0 0.0
        %257 = vmatprep.subr.mxu0 0.0
        %258 = vmatpush1.xpose.msra.mxu0 0.0
        %259 = vmatprep.subr.mxu0 0.0
        %260 = vmatpush1.xpose.msra.mxu0 0.0
        %261 = vmatprep.subr.mxu0 0.0
        %262 = vmatpush1.xpose.msra.mxu0 0.0
        %263 = vmatprep.subr.mxu0 0.0
        %264 = vmatpush1.xpose.msra.mxu0 0.0
        %265 = vmatprep.subr.mxu0 0.0
        %266 = vmatpush1.xpose.msra.mxu0 0.0
        %267 = vmatprep.subr.mxu0 0.0
        %268 = vmatpush1.xpose.msra.mxu0 0.0
        %269 = vmatprep.subr.mxu0 0.0
        %270 = vmatpush1.xpose.msra.mxu0 0.0
        %271 = vmatprep.subr.mxu0 0.0
        %272 = vmatpush1.xpose.msra.mxu0 0.0
        %273 = vmatprep.subr.mxu0 0.0
        %274 = vmatpush1.xpose.msra.mxu0 0.0
        %275 = vmatprep.subr.mxu0 0.0
        %276 = vmatpush1.xpose.msra.mxu0 0.0
        %277 = vmatprep.subr.mxu0 0.0
        %278 = vmatpush1.xpose.msra.mxu0 0.0
        %279 = vmatprep.subr.mxu0 0.0
        %280 = vmatpush1.xpose.msra.mxu0 0.0
        %281 = vmatprep.subr.mxu0 0.0
        %282 = vmatpush1.xpose.msra.mxu0 0.0
        %283 = vmatprep.subr.mxu0 0.0
        %284 = vmatpush1.xpose.msra.mxu0 0.0
        %285 = vmatprep.subr.mxu0 0.0
        %286 = vmatpush1.xpose.msra.mxu0 0.0
        %287 = vmatprep.subr.mxu0 0.0
        %288 = vmatpush1.xpose.msra.mxu0 0.0
        %289 = vmatprep.subr.mxu0 0.0
        %290 = vmatpush1.xpose.msra.mxu0 0.0
        %291 = vmatprep.subr.mxu0 0.0
        %292 = vmatpush1.xpose.msra.mxu0 0.0
        %293 = vmatprep.subr.mxu0 0.0
        %294 = vmatpush1.xpose.msra.mxu0 0.0
        %295 = vmatprep.subr.mxu0 0.0
        %296 = vmatpush1.xpose.msra.mxu0 0.0
        %297 = vmatprep.subr.mxu0 0.0
        %298 = vmatpush1.xpose.msra.mxu0 0.0
        %299 = vmatprep.subr.mxu0 0.0
        %300 = vmatpush1.xpose.msra.mxu0 0.0
        %301 = vmatprep.subr.mxu0 0.0
        %302 = vmatpush1.xpose.msra.mxu0 0.0
        %303 = vmatprep.subr.mxu0 0.0
        %304 = vmatpush1.xpose.msra.mxu0 0.0
        %305 = vmatprep.subr.mxu0 0.0
        %306 = vmatpush1.xpose.msra.mxu0 0.0
        %307 = vmatprep.subr.mxu0 0.0
        %308 = vmatpush1.xpose.msra.mxu0 0.0
        %309 = vmatprep.subr.mxu0 0.0
        %310 = vmatpush1.xpose.msra.mxu0 0.0
        %311 = vmatprep.subr.mxu0 0.0
        %312 = vmatpush1.xpose.msra.mxu0 0.0
        %313 = vmatprep.mubr.f32.mxu0 %v245
        %314 = vmatmul.mubr.f32.gmra.mrb[0].mxu0 %v244
        %v315 = vpop.f32.mrb[0].mxu0
        %v316 = vadd.f32 0.0, %v315
        %v317 = vpop.f32.mrb[0].mxu0
        %318 = vdwg.mxu0
        %v319 = vadd.f32 %v248, %v316
        %vm320 = vcmask 64512
        %321 = vst.msk [vmem:[#allocation2] sm:$0xff] %vm320, %v319
        %v322 = vld [vmem:[#allocation3] sm:$0xff]
        %323 = vmatprep.subr.mxu0 %v247
        %324 = vmatpush1.xpose.msra.mxu0 %v246
        %325 = vmatprep.subr.mxu0 0.0
        %326 = vmatpush1.xpose.msra.mxu0 0.0
        %327 = vmatprep.subr.mxu0 0.0
        %328 = vmatpush1.xpose.msra.mxu0 0.0
        %329 = vmatprep.subr.mxu0 0.0
        %330 = vmatpush1.xpose.msra.mxu0 0.0
        %331 = vmatprep.subr.mxu0 0.0
        %332 = vmatpush1.xpose.msra.mxu0 0.0
        %333 = vmatprep.subr.mxu0 0.0
        %334 = vmatpush1.xpose.msra.mxu0 0.0
        %335 = vmatprep.subr.mxu0 0.0
        %336 = vmatpush1.xpose.msra.mxu0 0.0
        %337 = vmatprep.subr.mxu0 0.0
        %338 = vmatpush1.xpose.msra.mxu0 0.0
        %339 = vmatprep.subr.mxu0 0.0
        %340 = vmatpush1.xpose.msra.mxu0 0.0
        %341 = vmatprep.subr.mxu0 0.0
        %342 = vmatpush1.xpose.msra.mxu0 0.0
        %343 = vmatprep.subr.mxu0 0.0
        %344 = vmatpush1.xpose.msra.mxu0 0.0
        %345 = vmatprep.subr.mxu0 0.0
        %346 = vmatpush1.xpose.msra.mxu0 0.0
        %347 = vmatprep.subr.mxu0 0.0
        %348 = vmatpush1.xpose.msra.mxu0 0.0
        %349 = vmatprep.subr.mxu0 0.0
        %350 = vmatpush1.xpose.msra.mxu0 0.0
        %351 = vmatprep.subr.mxu0 0.0
        %352 = vmatpush1.xpose.msra.mxu0 0.0
        %353 = vmatprep.subr.mxu0 0.0
        %354 = vmatpush1.xpose.msra.mxu0 0.0
        %355 = vmatprep.subr.mxu0 0.0
        %356 = vmatpush1.xpose.msra.mxu0 0.0
        %357 = vmatprep.subr.mxu0 0.0
        %358 = vmatpush1.xpose.msra.mxu0 0.0
        %359 = vmatprep.subr.mxu0 0.0
        %360 = vmatpush1.xpose.msra.mxu0 0.0
        %361 = vmatprep.subr.mxu0 0.0
        %362 = vmatpush1.xpose.msra.mxu0 0.0
        %363 = vmatprep.subr.mxu0 0.0
        %364 = vmatpush1.xpose.msra.mxu0 0.0
        %365 = vmatprep.subr.mxu0 0.0
        %366 = vmatpush1.xpose.msra.mxu0 0.0
        %367 = vmatprep.subr.mxu0 0.0
        %368 = vmatpush1.xpose.msra.mxu0 0.0
        %369 = vmatprep.subr.mxu0 0.0
        %370 = vmatpush1.xpose.msra.mxu0 0.0
        %371 = vmatprep.subr.mxu0 0.0
        %372 = vmatpush1.xpose.msra.mxu0 0.0
        %373 = vmatprep.subr.mxu0 0.0
        %374 = vmatpush1.xpose.msra.mxu0 0.0
        %375 = vmatprep.subr.mxu0 0.0
        %376 = vmatpush1.xpose.msra.mxu0 0.0
        %377 = vmatprep.subr.mxu0 0.0
        %378 = vmatpush1.xpose.msra.mxu0 0.0
        %379 = vmatprep.subr.mxu0 0.0
        %380 = vmatpush1.xpose.msra.mxu0 0.0
        %381 = vmatprep.subr.mxu0 0.0
        %382 = vmatpush1.xpose.msra.mxu0 0.0
        %383 = vmatprep.subr.mxu0 0.0
        %384 = vmatpush1.xpose.msra.mxu0 0.0
        %385 = vmatprep.subr.mxu0 0.0
        %386 = vmatpush1.xpose.msra.mxu0 0.0
        %387 = vmatprep.mubr.f32.mxu0 %v247
        %388 = vmatmul.mubr.f32.gmra.mrb[0].mxu0 %v246
        %v389 = vpop.f32.mrb[0].mxu0
        %v390 = vadd.f32 0.0, %v389
        %v391 = vpop.f32.mrb[0].mxu0
        %392 = vdwg.mxu0
        %v393 = vadd.f32 %v322, %v390
        %394 = vst.msk [vmem:[#allocation3] sm:$0xff] %vm320, %v393
        // Predicated region
        $region41: #{tpu_custom_call.1} parent=27 // pred_check
          %p395 = pneg %p237
        $region42: #{tpu_custom_call.1} parent=27 // pred_check_branch
          %397 = sbr.rel (%p395) target = $region44
        $region43: #{tpu_custom_call.1} parent=27 // pred_region
          %v398 = vld [vmem:[#allocation2] sm:$0xff]
          %v399 = vld [vmem:[#allocation3] sm:$0xff]
          %v400 = vsub.f32 %v398, %v399
          %v401 = vmul.f32 %v400, 0.0009765625
          %402 = vst.msk [vmem:[%s232] sm:$0xff] %vm320, %v401
        $region44: #{tpu_custom_call.1} parent=27 // pred_fallthru
          _
        %s403 = sand.u32 %s111, 1
        %s404 = scalar_lea.sflag [#allocation6], %s403
        %s405 = sand.u32 %s111, 1
        %s406 = smul.addr %s405, 8
        %s407 = scalar_lea.vmem [#allocation9], %s406
        // Predicated region
        $region45: #{tpu_custom_call.1} parent=27 // pred_check
          %p408 = pneg %p121
        $region46: #{tpu_custom_call.1} parent=27 // pred_check_branch
          %410 = sbr.rel (%p408) target = $region48
        $region47: #{tpu_custom_call.1} parent=27 // pred_region
          %s412 = ssub.s32 128, 128
          %413 = vsyncadd %s404, %s412
          %s414 = smul.addr %s27, 2
          %s415 = sadd.s32 %s28, %s414
          %s416 = smul.addr %s415, 128
          %s417 = scalar_lea.hbm %s2, %s416
          %s419 = sshll.u32 %s407, 4
          %s420 = int_to_ptr.vmem [resolvable:$true] %s419
          %422 = dma.vmem_to_hbm [thread:$0]  %s420, 128, %s417, %s404
        $region48: #{tpu_custom_call.1} parent=27 // pred_fallthru
          _
      $region28: #{tpu_custom_call.1} parent=5 // pred_fallthru
        _
      %p423 = scmp.le.s32.totalorder 2, %s17
      // Predicated region
      $region49: #{tpu_custom_call.1} parent=5 // pred_check
        %p424 = pneg %p423
      $region50: #{tpu_custom_call.1} parent=5 // pred_check_branch
        %426 = sbr.rel (%p424) target = $region52
      $region51: #{tpu_custom_call.1} parent=5 // pred_region
        %s427 = ssub.s32 %s17, 2
        // Predicated region
        $region53: #{tpu_custom_call.1} parent=51 // pred_check
          %p428 = pneg %p127
        $region54: #{tpu_custom_call.1} parent=51 // pred_check_branch
          %430 = sbr.rel (%p428) target = $region56
        $region55: #{tpu_custom_call.1} parent=51 // pred_region
          %s431 = sand.u32 %s112, 1
          %s432 = scalar_lea.sflag [#allocation6], %s431
          %s433 = sand.u32 %s112, 1
          %s434 = smul.addr %s433, 8
          %s435 = scalar_lea.vmem [#allocation9], %s434
          %436 = dma.done %s432, 128
        $region56: #{tpu_custom_call.1} parent=51 // pred_fallthru
          _
      $region52: #{tpu_custom_call.1} parent=5 // pred_fallthru
        _
    $region6: #{tpu_custom_call.1} parent=1 // loop_footer
      %s21 = sadd.s32 1, %s17
    $region7: #{tpu_custom_call.1} parent=1 // loop_footer_branch
      %16 = sbr.rel target = $region3
    $region8: #{tpu_custom_call.1} parent=1 // loop_exit
      _
    %437 = vsyncpa [#allocation5], 1
    %s438 = scalar_lea.sflag [#allocation5], 1
    %439 = vsyncpa %s438, 1
    %440 = vsyncpa [#allocation8], 1
    %s441 = scalar_lea.sflag [#allocation8], 1
    %442 = vsyncpa %s441, 1
    %443 = vsyncpa [#allocation6], 1
    %s444 = scalar_lea.sflag [#allocation6], 1
    %445 = vsyncpa %s444, 1

</llo_original>
